<compile_context>
chip_gen: v7x
topology: tpu7x:2x2x1
jax: 0.10.0
libtpu: 0.0.40
codegen_flags: <defaults>
</compile_context>

<pallas_src>
import math
from functools import partial

import numpy as np
import jax
import jax.numpy as jnp
from jax.experimental import pallas as pl
from jax.experimental.pallas import tpu as pltpu


def _round_up(x, m):
    return (x + m - 1) // m * m


# --------------------------------------------------------------------------
# Pallas kernels
# --------------------------------------------------------------------------

def _mm_kernel(a_ref, b_ref, bias_ref, *refs, apply_relu, has_res):
    """Tiled matmul with fused bias (+residual) (+ReLU) epilogue."""
    if has_res:
        res_ref, o_ref, acc_ref = refs
    else:
        (o_ref, acc_ref), res_ref = refs, None

    k = pl.program_id(2)

    @pl.when(k == 0)
    def _():
        acc_ref[...] = jnp.zeros_like(acc_ref)

    acc_ref[...] += jnp.dot(a_ref[...], b_ref[...],
                            preferred_element_type=jnp.float32)

    @pl.when(k == pl.num_programs(2) - 1)
    def _():
        r = acc_ref[...] + bias_ref[...]
        if has_res:
            r = r + res_ref[...]
        if apply_relu:
            r = jnp.maximum(r, 0.0)
        o_ref[...] = r.astype(o_ref.dtype)


def matmul_bias(a, wm_p, bias_p, *, relu, residual=None, out_cols=None):
    """(M,K) @ (Kp,Np) + bias (+residual) (+ReLU) on the MXU.

    `wm_p` is a pre-packed bf16 weight matrix padded to multiples of 128,
    `bias_p` is (1, Np) float32.  A is cast to bf16; accumulation is f32.
    """
    M, K = a.shape
    Kp, Np = wm_p.shape
    out_cols = Np if out_cols is None else out_cols

    tm = min(256, _round_up(max(M, 1), 16))   # bf16 sublane tile = 16
    Mp = _round_up(M, tm)
    tk = 256 if Kp % 256 == 0 else 128
    tn = 256 if Np % 256 == 0 else 128

    a_p = jnp.pad(a.astype(jnp.bfloat16), ((0, Mp - M), (0, Kp - K)))

    in_arrays = [a_p, wm_p, bias_p]
    in_specs = [
        pl.BlockSpec((tm, tk), lambda i, j, k: (i, k)),
        pl.BlockSpec((tk, tn), lambda i, j, k: (k, j)),
        pl.BlockSpec((1, tn), lambda i, j, k: (0, j)),
    ]
    has_res = residual is not None
    if has_res:
        res_p = jnp.pad(residual.astype(jnp.float32),
                        ((0, Mp - M), (0, Np - residual.shape[1])))
        in_arrays.append(res_p)
        # Block index independent of k -> fetched once per (i, j) output tile.
        in_specs.append(pl.BlockSpec((tm, tn), lambda i, j, k: (i, j)))

    out = pl.pallas_call(
        partial(_mm_kernel, apply_relu=relu, has_res=has_res),
        out_shape=jax.ShapeDtypeStruct((Mp, Np), jnp.float32),
        grid_spec=pltpu.PrefetchScalarGridSpec(
            num_scalar_prefetch=0,
            grid=(Mp // tm, Np // tn, Kp // tk),
            in_specs=in_specs,
            out_specs=pl.BlockSpec((tm, tn), lambda i, j, k: (i, j)),
            scratch_shapes=[pltpu.VMEM((tm, tn), jnp.float32)],
        ),
        compiler_params=pltpu.CompilerParams(
            dimension_semantics=("parallel", "parallel", "arbitrary"),
            vmem_limit_bytes=32 * 1024 * 1024),
    )(*in_arrays)
    return out[:M, :out_cols]


def _affine_rows_kernel(x_ref, a_ref, b_ref, o_ref):
    o_ref[...] = x_ref[...] * a_ref[...] + b_ref[...]


def normalize_input_nhwc(x, mean, std):
    """y = ((x + 1) * 0.5 - mean) / std, per channel, tiled over rows."""
    N, H, W, C = x.shape
    a = (0.5 / std).reshape(1, C).astype(jnp.float32)
    b = ((0.5 - mean) / std).reshape(1, C).astype(jnp.float32)
    M = N * H * W
    tr = min(1024, _round_up(M, 8))
    Mp = _round_up(M, tr)
    x2 = jnp.pad(x.reshape(M, C), ((0, Mp - M), (0, 0)))
    y = pl.pallas_call(
        _affine_rows_kernel,
        out_shape=jax.ShapeDtypeStruct((Mp, C), jnp.float32),
        grid_spec=pltpu.PrefetchScalarGridSpec(
            num_scalar_prefetch=0,
            grid=(Mp // tr,),
            in_specs=[pl.BlockSpec((tr, C), lambda i: (i, 0)),
                      pl.BlockSpec((1, C), lambda i: (0, 0)),
                      pl.BlockSpec((1, C), lambda i: (0, 0))],
            out_specs=pl.BlockSpec((tr, C), lambda i: (i, 0)),
        ),
        compiler_params=pltpu.CompilerParams(
            dimension_semantics=("parallel",)),
    )(x2, a, b)
    return y[:M].reshape(N, H, W, C)


def _gap_kernel(x_ref, o_ref, acc_ref, *, inv_hw):
    h = pl.program_id(1)

    @pl.when(h == 0)
    def _():
        acc_ref[...] = jnp.zeros_like(acc_ref)

    acc_ref[...] += jnp.sum(x_ref[...], axis=1, keepdims=True)

    @pl.when(h == pl.num_programs(1) - 1)
    def _():
        o_ref[...] = acc_ref[...] * inv_hw


def global_avg_pool_nhwc(x):
    """(N,H,W,C) -> (N,1,1,C), tiled/accumulated over H*W."""
    N, H, W, C = x.shape
    HW = H * W
    if HW <= 2048:
        thw, HWp = HW, HW
    else:
        thw = 512
        HWp = _round_up(HW, thw)
    x2 = jnp.pad(x.reshape(N, HW, C), ((0, 0), (0, HWp - HW), (0, 0)))
    out = pl.pallas_call(
        partial(_gap_kernel, inv_hw=1.0 / HW),
        out_shape=jax.ShapeDtypeStruct((N, 1, C), jnp.float32),
        grid_spec=pltpu.PrefetchScalarGridSpec(
            num_scalar_prefetch=0,
            grid=(N, HWp // thw),
            in_specs=[pl.BlockSpec((1, thw, C), lambda n, h: (n, h, 0))],
            out_specs=pl.BlockSpec((1, 1, C), lambda n, h: (n, 0, 0)),
            scratch_shapes=[pltpu.VMEM((1, 1, C), jnp.float32)],
        ),
        compiler_params=pltpu.CompilerParams(
            dimension_semantics=("parallel", "arbitrary")),
    )(x2)
    return out.reshape(N, 1, 1, C)


# --------------------------------------------------------------------------
# Conv / pool / resize wrappers (glue around the Pallas matmul hot path)
# --------------------------------------------------------------------------

def _im2col_nhwc(x, kh, kw, stride, padding, dilation):
    N, H, W, C = x.shape
    oh = (H + 2 * padding - dilation * (kh - 1) - 1) // stride + 1
    ow = (W + 2 * padding - dilation * (kw - 1) - 1) // stride + 1
    xp = jnp.pad(x, ((0, 0), (padding, padding), (padding, padding), (0, 0)))
    patches = []
    for i in range(kh):
        for j in range(kw):
            hs, ws = i * dilation, j * dilation
            patches.append(xp[:, hs:hs + (oh - 1) * stride + 1:stride,
                              ws:ws + (ow - 1) * stride + 1:stride, :])
    col = jnp.stack(patches, axis=3)                 # (N, oh, ow, kh*kw, C)
    return col.reshape(N * oh * ow, kh * kw * C), oh, ow


def conv2d(x, p, *, stride=1, padding=0, dilation=1, relu=False, residual=None):
    """NHWC conv with folded-BN bias, optional fused residual+ReLU epilogue."""
    N, H, W, C = x.shape
    kh = p['k']
    cout = p['cout']
    if kh == 1 and padding == 0:
        if stride != 1:
            x = x[:, ::stride, ::stride, :]
        oh, ow = x.shape[1], x.shape[2]
        a = x.reshape(N * oh * ow, C)
    else:
        a, oh, ow = _im2col_nhwc(x, kh, kh, stride, padding, dilation)
    res2 = None
    if residual is not None:
        res2 = residual.reshape(N * oh * ow, residual.shape[-1])
    y = matmul_bias(a, p['wm'], p['b'], relu=relu, residual=res2,
                    out_cols=cout)                   # (N*oh*ow, cout)
    return y.reshape(N, oh, ow, cout)


def maxpool_3x3_s2_nhwc(x):
    # glue: 3x3 / stride 2 / pad 1 max pool.
    return jax.lax.reduce_window(
        x, -jnp.inf, jax.lax.max,
        window_dimensions=(1, 3, 3, 1),
        window_strides=(1, 2, 2, 1),
        padding=((0, 0), (1, 1), (1, 1), (0, 0)))


def _bilinear_matrix(out_size, in_size):
    if in_size == 1:
        return jnp.ones((out_size, 1), jnp.float32)
    src = (np.arange(out_size) + 0.5) * (in_size / out_size) - 0.5
    src = np.clip(src, 0.0, in_size - 1)
    i0 = np.floor(src).astype(np.int32)
    i1 = np.minimum(i0 + 1, in_size - 1)
    frac = (src - i0).astype(np.float32)
    M = np.zeros((out_size, in_size), np.float32)
    M[np.arange(out_size), i0] += 1.0 - frac
    M[np.arange(out_size), i1] += frac
    return jnp.asarray(M)


def bilinear_resize_nhwc(x, out_h, out_w):
    # glue: F.interpolate(mode='bilinear', align_corners=False) as separable
    # interpolation matrices.
    # TODO(synk): route the large final upsample through the Pallas matmul.
    Mh = _bilinear_matrix(out_h, x.shape[1])
    Mw = _bilinear_matrix(out_w, x.shape[2])
    return jnp.einsum('nhwc,Hh,Ww->nHWc', x, Mh, Mw)


# --------------------------------------------------------------------------
# Parameters (deterministic synthetic init; BN folded; pre-packed weights)
# --------------------------------------------------------------------------

class _KeyGen:
    def __init__(self, seed):
        self._key = jax.random.PRNGKey(seed)

    def __call__(self):
        self._key, sub = jax.random.split(self._key)
        return sub


def _pack_conv(w, b):
    """Pack (Cout,Cin,kh,kw) f32 weight -> (Kp,Np) bf16 matrix + (1,Np) bias."""
    cout, cin, kh, kw = w.shape
    K = cin * kh * kw
    wm = jnp.transpose(w, (2, 3, 1, 0)).reshape(K, cout)   # (kh,kw,cin) x cout
    Kp, Np = _round_up(K, 128), _round_up(cout, 128)
    wm = jnp.pad(wm, ((0, Kp - K), (0, Np - cout))).astype(jnp.bfloat16)
    bp = jnp.pad(b.reshape(1, cout), ((0, 0), (0, Np - cout))).astype(jnp.float32)
    return {'wm': wm, 'b': bp, 'cout': cout, 'cin': cin, 'k': kh}


def _conv_bn(kg, cin, cout, k):
    fan_in = cin * k * k
    w = jax.random.normal(kg(), (cout, cin, k, k), jnp.float32) * (0.5 / math.sqrt(fan_in))
    b = jax.random.normal(kg(), (cout,), jnp.float32) * 0.01
    return _pack_conv(w, b)


def build_params(output_channels=2, seed=0):
    kg = _KeyGen(seed)
    params = {'conv1': _conv_bn(kg, 3, 64, 7)}

    # ResNet-101 with replace_stride_with_dilation = [False, True, True]
    inplanes, dilation = 64, 1
    layer_cfg = [(64, 3, 1, False), (128, 4, 2, False),
                 (256, 23, 2, True), (512, 3, 2, True)]
    layers = []
    for planes, blocks, stride, dilate in layer_cfg:
        prev_dilation = dilation
        if dilate:
            dilation *= stride
            stride = 1
        blks = []
        for b in range(blocks):
            cin = inplanes if b == 0 else planes * 4
            blk = {
                'conv1': _conv_bn(kg, cin, planes, 1),
                'conv2': _conv_bn(kg, planes, planes, 3),
                'conv3': _conv_bn(kg, planes, planes * 4, 1),
            }
            if b == 0:
                blk_stride, blk_dil = stride, prev_dilation
                has_ds = (stride != 1) or (inplanes != planes * 4)
                if has_ds:
                    blk['ds'] = _conv_bn(kg, inplanes, planes * 4, 1)
            else:
                blk_stride, blk_dil, has_ds = 1, dilation, False
            blk['meta'] = (blk_stride, blk_dil, has_ds)
            blks.append(blk)
        inplanes = planes * 4
        layers.append(blks)
    params['layers'] = layers

    # DeepLabHead: ASPP(2048, [12, 24, 36]) + 3x3 conv + 1x1 classifier
    aspp = {'b0': _conv_bn(kg, 2048, 256, 1)}
    for name in ('b1', 'b2', 'b3'):
        aspp[name] = _conv_bn(kg, 2048, 256, 3)
    aspp['pool'] = _conv_bn(kg, 2048, 256, 1)
    aspp['project'] = _conv_bn(kg, 5 * 256, 256, 1)
    params['aspp'] = aspp
    params['head_conv'] = _conv_bn(kg, 256, 256, 3)
    params['classifier'] = _pack_conv(
        jax.random.normal(kg(), (output_channels, 256, 1, 1), jnp.float32)
        * (1.0 / math.sqrt(256)),
        jax.random.normal(kg(), (output_channels,), jnp.float32) * 0.01)
    return params


# --------------------------------------------------------------------------
# Forward pass
# --------------------------------------------------------------------------

INPUT_MEAN = jnp.array([0.485, 0.456, 0.406], jnp.float32)
INPUT_STD = jnp.array([0.229, 0.224, 0.225], jnp.float32)


def bottleneck_forward(x, blk):
    stride, dil, has_ds = blk['meta']
    out = conv2d(x, blk['conv1'], relu=True)
    out = conv2d(out, blk['conv2'], stride=stride, padding=dil,
                 dilation=dil, relu=True)
    if has_ds:
        identity = conv2d(x, blk['ds'], stride=stride, relu=False)
    else:
        identity = x
    # Residual add + ReLU fused into the conv3 matmul epilogue.
    return conv2d(out, blk['conv3'], relu=True, residual=identity)


def aspp_forward(x, p):
    h, w = x.shape[1], x.shape[2]
    branches = [conv2d(x, p['b0'], relu=True)]
    for rate, name in zip((12, 24, 36), ('b1', 'b2', 'b3')):
        branches.append(conv2d(x, p[name], padding=rate, dilation=rate, relu=True))
    pooled = global_avg_pool_nhwc(x)
    pooled = conv2d(pooled, p['pool'], relu=True)
    branches.append(bilinear_resize_nhwc(pooled, h, w))
    cat = jnp.concatenate(branches, axis=-1)
    out = conv2d(cat, p['project'], relu=True)
    # Dropout(0.5): identity in inference mode.
    return out


def deeplabv3_forward(params, x):
    N, C, H, W = x.shape
    x = jnp.transpose(x, (0, 2, 3, 1))            # NCHW -> NHWC (once)
    # x = 0.5*(x+1); x = (x - mean)/std  -- fused tiled Pallas elementwise
    x = normalize_input_nhwc(x, INPUT_MEAN, INPUT_STD)
    x = conv2d(x, params['conv1'], stride=2, padding=3, relu=True)
    x = maxpool_3x3_s2_nhwc(x)
    for blks in params['layers']:
        for blk in blks:
            x = bottleneck_forward(x, blk)
    x = aspp_forward(x, params['aspp'])
    x = conv2d(x, params['head_conv'], padding=1, relu=True)
    x = conv2d(x, params['classifier'], relu=False)
    x = bilinear_resize_nhwc(x, H, W)             # out['out']
    return jnp.transpose(x, (0, 3, 1, 2))         # NHWC -> NCHW (once)


if __name__ == "__main__":
    key = jax.random.PRNGKey(0)
    x = jax.random.uniform(key, (2, 3, 16, 16), jnp.float32,
                           minval=-1.0, maxval=1.0)
    params = build_params(output_channels=2, seed=0)
    out = deeplabv3_forward(params, x)
    out = jax.block_until_ready(out)
    assert out.shape == (2, 2, 16, 16), out.shape
    assert bool(jnp.all(jnp.isfinite(out)))
    print("KERNEL_OK")
</pallas_src>

<mosaic_0001>
module attributes {stable_mosaic.version = 11 : i64} {
  func.func @_affine_rows_kernel(%arg0: i32, %arg1: memref<512x3xf32, #tpu.memory_space<vmem>>, %arg2: memref<1x3xf32, #tpu.memory_space<vmem>>, %arg3: memref<1x3xf32, #tpu.memory_space<vmem>>, %arg4: memref<512x3xf32, #tpu.memory_space<vmem>>) attributes {dimension_semantics = [#tpu.dimension_semantics<parallel>], iteration_bounds = array<i64: 1>, scalar_prefetch = 0 : i64, scratch_operands = 0 : i64, tpu.core_type = #tpu.core_type<tc>, window_params = [{transform_indices = @transform_0, window_bounds = array<i64: 512, 3>}, {pipeline_mode = #tpu.pipeline_mode<synchronous>, transform_indices = @transform_1, window_bounds = array<i64: 1, 3>}, {pipeline_mode = #tpu.pipeline_mode<synchronous>, transform_indices = @transform_2, window_bounds = array<i64: 1, 3>}, {transform_indices = @transform_3, window_bounds = array<i64: 512, 3>}]} {
    %c0 = arith.constant 0 : index
    %c0_0 = arith.constant 0 : index
    %0 = vector.load %arg1[%c0, %c0_0] : memref<512x3xf32, #tpu.memory_space<vmem>>, vector<512x3xf32>
    %c0_1 = arith.constant 0 : index
    %c0_2 = arith.constant 0 : index
    %1 = vector.load %arg2[%c0_1, %c0_2] : memref<1x3xf32, #tpu.memory_space<vmem>>, vector<1x3xf32>
    %2 = vector.broadcast %1 : vector<1x3xf32> to vector<512x3xf32>
    %3 = arith.mulf %0, %2 : vector<512x3xf32>
    %c0_3 = arith.constant 0 : index
    %c0_4 = arith.constant 0 : index
    %4 = vector.load %arg3[%c0_3, %c0_4] : memref<1x3xf32, #tpu.memory_space<vmem>>, vector<1x3xf32>
    %5 = vector.broadcast %4 : vector<1x3xf32> to vector<512x3xf32>
    %6 = arith.addf %3, %5 : vector<512x3xf32>
    %c0_5 = arith.constant 0 : index
    %c0_6 = arith.constant 0 : index
    %7 = vector.load %arg4[%c0_5, %c0_6] : memref<512x3xf32, #tpu.memory_space<vmem>>, vector<512x3xf32>
    tpu.vector_store %arg4[%c0_5, %c0_6], %6 {strides = array<i32>} : memref<512x3xf32, #tpu.memory_space<vmem>>, vector<512x3xf32>,
    return
  }
  func.func @transform_0(%arg0: i32) -> (i32, i32) {
    %c0_i32 = arith.constant 0 : i32
    %c0_i32_0 = arith.constant 0 : i32
    return %arg0, %c0_i32 : i32, i32
  }
  func.func @transform_1(%arg0: i32) -> (i32, i32) {
    %c0_i32 = arith.constant 0 : i32
    %c0_i32_0 = arith.constant 0 : i32
    %c0_i32_1 = arith.constant 0 : i32
    return %c0_i32, %c0_i32_0 : i32, i32
  }
  func.func @transform_2(%arg0: i32) -> (i32, i32) {
    %c0_i32 = arith.constant 0 : i32
    %c0_i32_0 = arith.constant 0 : i32
    %c0_i32_1 = arith.constant 0 : i32
    return %c0_i32, %c0_i32_0 : i32, i32
  }
  func.func @transform_3(%arg0: i32) -> (i32, i32) {
    %c0_i32 = arith.constant 0 : i32
    %c0_i32_0 = arith.constant 0 : i32
    return %arg0, %c0_i32 : i32, i32
  }
}

</mosaic_0001>

<llo_original>
// kernel: tpu_custom_call.1
$region0: #{tpu_custom_call.1}
  #allocation0 [shape = 'u32[]', space=smem, size = 0x4, offset = 0x4, fixed_abs, tag = 'smem constant byte address 0x4 - core index']
  #allocation1 [shape = 'u32[144,128]{1,0:T(1,128)}', space=vmem, size = 0x12000, scoped, tag = 'internal scratch']
  %s0 = inlined_call_operand.vmem [shape: f32[512,3], index: 0, kind: input, shape index: {}]
  %s1 = inlined_call_operand.vmem [shape: f32[1,3], index: 1, kind: input, shape index: {}]
  %s2 = inlined_call_operand.vmem [shape: f32[1,3], index: 2, kind: input, shape index: {}]
  %s3 = inlined_call_operand.vmem [shape: f32[512,3], index: 3, kind: output, shape index: {}]
  %s4 = sld [smem:[#allocation0]]
  $region22: #{tpu_custom_call.1} parent=0
    _
  %s6 = ssub.s32 1, %s4
  %s7 = scalar_select 0, %s6, %s4
  // Predicated region
  $region2: #{tpu_custom_call.1} parent=0 // pred_check
    _
  $region3: #{tpu_custom_call.1} parent=0 // pred_check_branch
    %9 = sbr.rel (0) target = $region5
  $region4: #{tpu_custom_call.1} parent=0 // pred_region
    _
  $region5: #{tpu_custom_call.1} parent=0 // pred_fallthru
    _
  // Predicated region
  $region6: #{tpu_custom_call.1} parent=0 // pred_check
    _
  $region7: #{tpu_custom_call.1} parent=0 // pred_check_branch
    %11 = sbr.rel (0) target = $region9
  $region8: #{tpu_custom_call.1} parent=0 // pred_region
    _
  $region9: #{tpu_custom_call.1} parent=0 // pred_fallthru
    _
  // Predicated region
  $region10: #{tpu_custom_call.1} parent=0 // pred_check
    _
  $region11: #{tpu_custom_call.1} parent=0 // pred_check_branch
    %13 = sbr.rel (0) target = $region13
  $region12: #{tpu_custom_call.1} parent=0 // pred_region
    _
  $region13: #{tpu_custom_call.1} parent=0 // pred_fallthru
    _
  %v14 = vld [vmem:[%s0] sm:$0xff]
  %v15 = vld [vmem:[%s0 + $0x8] sm:$0xff]
  %v16 = vld [vmem:[%s0 + $0x10] sm:$0xff]
  %v17 = vld [vmem:[%s0 + $0x18] sm:$0xff]
  %v18 = vld [vmem:[%s0 + $0x20] sm:$0xff]
  %v19 = vld [vmem:[%s0 + $0x28] sm:$0xff]
  %v20 = vld [vmem:[%s0 + $0x30] sm:$0xff]
  %v21 = vld [vmem:[%s0 + $0x38] sm:$0xff]
  %v22 = vld [vmem:[%s0 + $0x40] sm:$0xff]
  %v23 = vld [vmem:[%s0 + $0x48] sm:$0xff]
  %v24 = vld [vmem:[%s0 + $0x50] sm:$0xff]
  %v25 = vld [vmem:[%s0 + $0x58] sm:$0xff]
  %v26 = vld [vmem:[%s0 + $0x60] sm:$0xff]
  %v27 = vld [vmem:[%s0 + $0x68] sm:$0xff]
  %v28 = vld [vmem:[%s0 + $0x70] sm:$0xff]
  %v29 = vld [vmem:[%s0 + $0x78] sm:$0xff]
  %v30 = vld [vmem:[%s0 + $0x80] sm:$0xff]
  %v31 = vld [vmem:[%s0 + $0x88] sm:$0xff]
  %v32 = vld [vmem:[%s0 + $0x90] sm:$0xff]
  %v33 = vld [vmem:[%s0 + $0x98] sm:$0xff]
  %v34 = vld [vmem:[%s0 + $0xa0] sm:$0xff]
  %v35 = vld [vmem:[%s0 + $0xa8] sm:$0xff]
  %v36 = vld [vmem:[%s0 + $0xb0] sm:$0xff]
  %v37 = vld [vmem:[%s0 + $0xb8] sm:$0xff]
  %v38 = vld [vmem:[%s0 + $0xc0] sm:$0xff]
  %v39 = vld [vmem:[%s0 + $0xc8] sm:$0xff]
  %v40 = vld [vmem:[%s0 + $0xd0] sm:$0xff]
  %v41 = vld [vmem:[%s0 + $0xd8] sm:$0xff]
  %v42 = vld [vmem:[%s0 + $0xe0] sm:$0xff]
  %v43 = vld [vmem:[%s0 + $0xe8] sm:$0xff]
  %v44 = vld [vmem:[%s0 + $0xf0] sm:$0xff]
  %v45 = vld [vmem:[%s0 + $0xf8] sm:$0xff]
  %v46 = vld [vmem:[%s0 + $0x100] sm:$0xff]
  %v47 = vld [vmem:[%s0 + $0x108] sm:$0xff]
  %v48 = vld [vmem:[%s0 + $0x110] sm:$0xff]
  %v49 = vld [vmem:[%s0 + $0x118] sm:$0xff]
  %v50 = vld [vmem:[%s0 + $0x120] sm:$0xff]
  %v51 = vld [vmem:[%s0 + $0x128] sm:$0xff]
  %v52 = vld [vmem:[%s0 + $0x130] sm:$0xff]
  %v53 = vld [vmem:[%s0 + $0x138] sm:$0xff]
  %v54 = vld [vmem:[%s0 + $0x140] sm:$0xff]
  %v55 = vld [vmem:[%s0 + $0x148] sm:$0xff]
  %v56 = vld [vmem:[%s0 + $0x150] sm:$0xff]
  %v57 = vld [vmem:[%s0 + $0x158] sm:$0xff]
  %v58 = vld [vmem:[%s0 + $0x160] sm:$0xff]
  %v59 = vld [vmem:[%s0 + $0x168] sm:$0xff]
  %v60 = vld [vmem:[%s0 + $0x170] sm:$0xff]
  %v61 = vld [vmem:[%s0 + $0x178] sm:$0xff]
  %v62 = vld [vmem:[%s0 + $0x180] sm:$0xff]
  %v63 = vld [vmem:[%s0 + $0x188] sm:$0xff]
  %v64 = vld [vmem:[%s0 + $0x190] sm:$0xff]
  %v65 = vld [vmem:[%s0 + $0x198] sm:$0xff]
  %v66 = vld [vmem:[%s0 + $0x1a0] sm:$0xff]
  %v67 = vld [vmem:[%s0 + $0x1a8] sm:$0xff]
  %v68 = vld [vmem:[%s0 + $0x1b0] sm:$0xff]
  %v69 = vld [vmem:[%s0 + $0x1b8] sm:$0xff]
  %v70 = vld [vmem:[%s0 + $0x1c0] sm:$0xff]
  %v71 = vld [vmem:[%s0 + $0x1c8] sm:$0xff]
  %v72 = vld [vmem:[%s0 + $0x1d0] sm:$0xff]
  %v73 = vld [vmem:[%s0 + $0x1d8] sm:$0xff]
  %v74 = vld [vmem:[%s0 + $0x1e0] sm:$0xff]
  %v75 = vld [vmem:[%s0 + $0x1e8] sm:$0xff]
  %v76 = vld [vmem:[%s0 + $0x1f0] sm:$0xff]
  %v77 = vld [vmem:[%s0 + $0x1f8] sm:$0xff]
  %v78 = vld [vmem:[%s1] sm:$0x1]
  %v80 = vlaneseq
  %v81 = vshrl.u32 %v80, 7
  %v82 = vsub.s32 0, %v81
  %v83 = vrot.slane %v78, %v82
  %v85 = vmul.f32 %v14, %v83
  %v86 = vmul.f32 %v15, %v83
  %v87 = vmul.f32 %v16, %v83
  %v88 = vmul.f32 %v17, %v83
  %v89 = vmul.f32 %v18, %v83
  %v90 = vmul.f32 %v19, %v83
  %v91 = vmul.f32 %v20, %v83
  %v92 = vmul.f32 %v21, %v83
  %v93 = vmul.f32 %v22, %v83
  %v94 = vmul.f32 %v23, %v83
  %v95 = vmul.f32 %v24, %v83
  %v96 = vmul.f32 %v25, %v83
  %v97 = vmul.f32 %v26, %v83
  %v98 = vmul.f32 %v27, %v83
  %v99 = vmul.f32 %v28, %v83
  %v100 = vmul.f32 %v29, %v83
  %v101 = vmul.f32 %v30, %v83
  %v102 = vmul.f32 %v31, %v83
  %v103 = vmul.f32 %v32, %v83
  %v104 = vmul.f32 %v33, %v83
  %v105 = vmul.f32 %v34, %v83
  %v106 = vmul.f32 %v35, %v83
  %v107 = vmul.f32 %v36, %v83
  %v108 = vmul.f32 %v37, %v83
  %v109 = vmul.f32 %v38, %v83
  %v110 = vmul.f32 %v39, %v83
  %v111 = vmul.f32 %v40, %v83
  %v112 = vmul.f32 %v41, %v83
  %v113 = vmul.f32 %v42, %v83
  %v114 = vmul.f32 %v43, %v83
  %v115 = vmul.f32 %v44, %v83
  %v116 = vmul.f32 %v45, %v83
  %v117 = vmul.f32 %v46, %v83
  %v118 = vmul.f32 %v47, %v83
  %v119 = vmul.f32 %v48, %v83
  %v120 = vmul.f32 %v49, %v83
  %v121 = vmul.f32 %v50, %v83
  %v122 = vmul.f32 %v51, %v83
  %v123 = vmul.f32 %v52, %v83
  %v124 = vmul.f32 %v53, %v83
  %v125 = vmul.f32 %v54, %v83
  %v126 = vmul.f32 %v55, %v83
  %v127 = vmul.f32 %v56, %v83
  %v128 = vmul.f32 %v57, %v83
  %v129 = vmul.f32 %v58, %v83
  %v130 = vmul.f32 %v59, %v83
  %v131 = vmul.f32 %v60, %v83
  %v132 = vmul.f32 %v61, %v83
  %v133 = vmul.f32 %v62, %v83
  %v134 = vmul.f32 %v63, %v83
  %v135 = vmul.f32 %v64, %v83
  %v136 = vmul.f32 %v65, %v83
  %v137 = vmul.f32 %v66, %v83
  %v138 = vmul.f32 %v67, %v83
  %v139 = vmul.f32 %v68, %v83
  %v140 = vmul.f32 %v69, %v83
  %v141 = vmul.f32 %v70, %v83
  %v142 = vmul.f32 %v71, %v83
  %v143 = vmul.f32 %v72, %v83
  %v144 = vmul.f32 %v73, %v83
  %v145 = vmul.f32 %v74, %v83
  %v146 = vmul.f32 %v75, %v83
  %v147 = vmul.f32 %v76, %v83
  %v148 = vmul.f32 %v77, %v83
  %v149 = vld [vmem:[%s2] sm:$0x1]
  %v151 = vlaneseq
  %v152 = vshrl.u32 %v151, 7
  %v153 = vsub.s32 0, %v152
  %v154 = vrot.slane %v149, %v153
  %v156 = vadd.f32 %v85, %v154
  %v157 = vadd.f32 %v86, %v154
  %v158 = vadd.f32 %v87, %v154
  %v159 = vadd.f32 %v88, %v154
  %v160 = vadd.f32 %v89, %v154
  %v161 = vadd.f32 %v90, %v154
  %v162 = vadd.f32 %v91, %v154
  %v163 = vadd.f32 %v92, %v154
  %v164 = vadd.f32 %v93, %v154
  %v165 = vadd.f32 %v94, %v154
  %v166 = vadd.f32 %v95, %v154
  %v167 = vadd.f32 %v96, %v154
  %v168 = vadd.f32 %v97, %v154
  %v169 = vadd.f32 %v98, %v154
  %v170 = vadd.f32 %v99, %v154
  %v171 = vadd.f32 %v100, %v154
  %v172 = vadd.f32 %v101, %v154
  %v173 = vadd.f32 %v102, %v154
  %v174 = vadd.f32 %v103, %v154
  %v175 = vadd.f32 %v104, %v154
  %v176 = vadd.f32 %v105, %v154
  %v177 = vadd.f32 %v106, %v154
  %v178 = vadd.f32 %v107, %v154
  %v179 = vadd.f32 %v108, %v154
  %v180 = vadd.f32 %v109, %v154
  %v181 = vadd.f32 %v110, %v154
  %v182 = vadd.f32 %v111, %v154
  %v183 = vadd.f32 %v112, %v154
  %v184 = vadd.f32 %v113, %v154
  %v185 = vadd.f32 %v114, %v154
  %v186 = vadd.f32 %v115, %v154
  %v187 = vadd.f32 %v116, %v154
  %v188 = vadd.f32 %v117, %v154
  %v189 = vadd.f32 %v118, %v154
  %v190 = vadd.f32 %v119, %v154
  %v191 = vadd.f32 %v120, %v154
  %v192 = vadd.f32 %v121, %v154
  %v193 = vadd.f32 %v122, %v154
  %v194 = vadd.f32 %v123, %v154
  %v195 = vadd.f32 %v124, %v154
  %v196 = vadd.f32 %v125, %v154
  %v197 = vadd.f32 %v126, %v154
  %v198 = vadd.f32 %v127, %v154
  %v199 = vadd.f32 %v128, %v154
  %v200 = vadd.f32 %v129, %v154
  %v201 = vadd.f32 %v130, %v154
  %v202 = vadd.f32 %v131, %v154
  %v203 = vadd.f32 %v132, %v154
  %v204 = vadd.f32 %v133, %v154
  %v205 = vadd.f32 %v134, %v154
  %v206 = vadd.f32 %v135, %v154
  %v207 = vadd.f32 %v136, %v154
  %v208 = vadd.f32 %v137, %v154
  %v209 = vadd.f32 %v138, %v154
  %v210 = vadd.f32 %v139, %v154
  %v211 = vadd.f32 %v140, %v154
  %v212 = vadd.f32 %v141, %v154
  %v213 = vadd.f32 %v142, %v154
  %v214 = vadd.f32 %v143, %v154
  %v215 = vadd.f32 %v144, %v154
  %v216 = vadd.f32 %v145, %v154
  %v217 = vadd.f32 %v146, %v154
  %v218 = vadd.f32 %v147, %v154
  %v219 = vadd.f32 %v148, %v154
  %vm220 = vcmask 23552
  %221 = vst.msk [vmem:[%s3] sm:$0xff] %vm220, %v156
  %222 = vst.msk [vmem:[%s3 + $0x8] sm:$0xff] %vm220, %v157
  %223 = vst.msk [vmem:[%s3 + $0x10] sm:$0xff] %vm220, %v158
  %224 = vst.msk [vmem:[%s3 + $0x18] sm:$0xff] %vm220, %v159
  %225 = vst.msk [vmem:[%s3 + $0x20] sm:$0xff] %vm220, %v160
  %226 = vst.msk [vmem:[%s3 + $0x28] sm:$0xff] %vm220, %v161
  %227 = vst.msk [vmem:[%s3 + $0x30] sm:$0xff] %vm220, %v162
  %228 = vst.msk [vmem:[%s3 + $0x38] sm:$0xff] %vm220, %v163
  %229 = vst.msk [vmem:[%s3 + $0x40] sm:$0xff] %vm220, %v164
  %230 = vst.msk [vmem:[%s3 + $0x48] sm:$0xff] %vm220, %v165
  %231 = vst.msk [vmem:[%s3 + $0x50] sm:$0xff] %vm220, %v166
  %232 = vst.msk [vmem:[%s3 + $0x58] sm:$0xff] %vm220, %v167
  %233 = vst.msk [vmem:[%s3 + $0x60] sm:$0xff] %vm220, %v168
  %234 = vst.msk [vmem:[%s3 + $0x68] sm:$0xff] %vm220, %v169
  %235 = vst.msk [vmem:[%s3 + $0x70] sm:$0xff] %vm220, %v170
  %236 = vst.msk [vmem:[%s3 + $0x78] sm:$0xff] %vm220, %v171
  %237 = vst.msk [vmem:[%s3 + $0x80] sm:$0xff] %vm220, %v172
  %238 = vst.msk [vmem:[%s3 + $0x88] sm:$0xff] %vm220, %v173
  %239 = vst.msk [vmem:[%s3 + $0x90] sm:$0xff] %vm220, %v174
  %240 = vst.msk [vmem:[%s3 + $0x98] sm:$0xff] %vm220, %v175
  %241 = vst.msk [vmem:[%s3 + $0xa0] sm:$0xff] %vm220, %v176
  %242 = vst.msk [vmem:[%s3 + $0xa8] sm:$0xff] %vm220, %v177
  %243 = vst.msk [vmem:[%s3 + $0xb0] sm:$0xff] %vm220, %v178
  %244 = vst.msk [vmem:[%s3 + $0xb8] sm:$0xff] %vm220, %v179
  %245 = vst.msk [vmem:[%s3 + $0xc0] sm:$0xff] %vm220, %v180
  %246 = vst.msk [vmem:[%s3 + $0xc8] sm:$0xff] %vm220, %v181
  %247 = vst.msk [vmem:[%s3 + $0xd0] sm:$0xff] %vm220, %v182
  %248 = vst.msk [vmem:[%s3 + $0xd8] sm:$0xff] %vm220, %v183
  %249 = vst.msk [vmem:[%s3 + $0xe0] sm:$0xff] %vm220, %v184
  %250 = vst.msk [vmem:[%s3 + $0xe8] sm:$0xff] %vm220, %v185
  %251 = vst.msk [vmem:[%s3 + $0xf0] sm:$0xff] %vm220, %v186
  %252 = vst.msk [vmem:[%s3 + $0xf8] sm:$0xff] %vm220, %v187
  %253 = vst.msk [vmem:[%s3 + $0x100] sm:$0xff] %vm220, %v188
  %254 = vst.msk [vmem:[%s3 + $0x108] sm:$0xff] %vm220, %v189
  %255 = vst.msk [vmem:[%s3 + $0x110] sm:$0xff] %vm220, %v190
  %256 = vst.msk [vmem:[%s3 + $0x118] sm:$0xff] %vm220, %v191
  %257 = vst.msk [vmem:[%s3 + $0x120] sm:$0xff] %vm220, %v192
  %258 = vst.msk [vmem:[%s3 + $0x128] sm:$0xff] %vm220, %v193
  %259 = vst.msk [vmem:[%s3 + $0x130] sm:$0xff] %vm220, %v194
  %260 = vst.msk [vmem:[%s3 + $0x138] sm:$0xff] %vm220, %v195
  %261 = vst.msk [vmem:[%s3 + $0x140] sm:$0xff] %vm220, %v196
  %262 = vst.msk [vmem:[%s3 + $0x148] sm:$0xff] %vm220, %v197
  %263 = vst.msk [vmem:[%s3 + $0x150] sm:$0xff] %vm220, %v198
  %264 = vst.msk [vmem:[%s3 + $0x158] sm:$0xff] %vm220, %v199
  %265 = vst.msk [vmem:[%s3 + $0x160] sm:$0xff] %vm220, %v200
  %266 = vst.msk [vmem:[%s3 + $0x168] sm:$0xff] %vm220, %v201
  %267 = vst.msk [vmem:[%s3 + $0x170] sm:$0xff] %vm220, %v202
  %268 = vst.msk [vmem:[%s3 + $0x178] sm:$0xff] %vm220, %v203
  %269 = vst.msk [vmem:[%s3 + $0x180] sm:$0xff] %vm220, %v204
  %270 = vst.msk [vmem:[%s3 + $0x188] sm:$0xff] %vm220, %v205
  %271 = vst.msk [vmem:[%s3 + $0x190] sm:$0xff] %vm220, %v206
  %272 = vst.msk [vmem:[%s3 + $0x198] sm:$0xff] %vm220, %v207
  %273 = vst.msk [vmem:[%s3 + $0x1a0] sm:$0xff] %vm220, %v208
  %274 = vst.msk [vmem:[%s3 + $0x1a8] sm:$0xff] %vm220, %v209
  %275 = vst.msk [vmem:[%s3 + $0x1b0] sm:$0xff] %vm220, %v210
  %276 = vst.msk [vmem:[%s3 + $0x1b8] sm:$0xff] %vm220, %v211
  %277 = vst.msk [vmem:[%s3 + $0x1c0] sm:$0xff] %vm220, %v212
  %278 = vst.msk [vmem:[%s3 + $0x1c8] sm:$0xff] %vm220, %v213
  %279 = vst.msk [vmem:[%s3 + $0x1d0] sm:$0xff] %vm220, %v214
  %280 = vst.msk [vmem:[%s3 + $0x1d8] sm:$0xff] %vm220, %v215
  %281 = vst.msk [vmem:[%s3 + $0x1e0] sm:$0xff] %vm220, %v216
  %282 = vst.msk [vmem:[%s3 + $0x1e8] sm:$0xff] %vm220, %v217
  %283 = vst.msk [vmem:[%s3 + $0x1f0] sm:$0xff] %vm220, %v218
  %284 = vst.msk [vmem:[%s3 + $0x1f8] sm:$0xff] %vm220, %v219
  // Predicated region
  $region14: #{tpu_custom_call.1} parent=0 // pred_check
    _
  $region15: #{tpu_custom_call.1} parent=0 // pred_check_branch
    %286 = sbr.rel (0) target = $region17
  $region16: #{tpu_custom_call.1} parent=0 // pred_region
    _
  $region17: #{tpu_custom_call.1} parent=0 // pred_fallthru
    _
  // Predicated region
  $region18: #{tpu_custom_call.1} parent=0 // pred_check
    _
  $region19: #{tpu_custom_call.1} parent=0 // pred_check_branch
    %288 = sbr.rel (0) target = $region21
  $region20: #{tpu_custom_call.1} parent=0 // pred_region
    _
  $region21: #{tpu_custom_call.1} parent=0 // pred_fallthru
    _

</llo_original>
